<compile_context>
chip_gen: v6e
topology: v6e:2x2x1
jax: 0.10.0
libtpu: 0.0.40
codegen_flags: <defaults>
</compile_context>

<pallas_src>
import functools

import jax
import jax.numpy as jnp
import numpy as np
from jax.experimental import pallas as pl
from jax.experimental.pallas import tpu as pltpu

_LANE = 512           # lane-dense slab width (multiple of 128)
_MAX_TILE_ROWS = 1024  # 4 f32 streams x 1024x512 = 8 MiB/step, 16 MiB double-buffered


def _hooknet_loss_kernel(tp_ref, tl_ref, cp_ref, cl_ref, out_ref, acc_ref, *,
                         alpha, gamma, target_importance,
                         n_tiles, tiles_per_split, tile_rows, lane,
                         valid_in_last_tile, has_dup):
    c = pl.program_id(0)            # core-split axis ("parallel"; 2 TCs on v7x)
    i = pl.program_id(1)            # per-core reduction axis ("arbitrary")
    t = c * tiles_per_split + i     # global tile index (>= n_tiles only on dup tiles)

    @pl.when(i == 0)
    def _init():
        acc_ref[...] = jnp.zeros_like(acc_ref)

    def focal_elem(pred_ref, label_ref):
        x = pred_ref[...].astype(jnp.float32)
        y = label_ref[...].astype(jnp.float32)
        # sigmoid via tanh: 1 EUP op + 2 VALU ops instead of exp + full divide.
        p = 0.5 * jnp.tanh(0.5 * x) + 0.5
        # BCEWithLogits applied to the *probability* p (faithful to the reference).
        # p in [0,1]  =>  max(p,0) == p and |p| == p, so:
        q = jnp.exp(-p)
        logpt = p * (1.0 - y) + jnp.log1p(q)
        # alpha.gather(0, y): branch-free FMA, constant-folded when alpha == 0.5.
        if alpha == 0.5:
            at_logpt = 0.5 * logpt
        else:
            at_logpt = ((1.0 - alpha) + (2.0 * alpha - 1.0) * y) * logpt
        if gamma == 0.0:
            return at_logpt                      # (1 - pt)^0 == 1: skip everything below
        # exp(logpt) = exp(p*(1-y)) * (1+q); reuse q so no second exp is needed:
        #   y==1 -> (1+q) ;  y==0 -> (1+q)/q   (exact divide; q in [e^-1, 1], well-conditioned)
        exp_logpt = (1.0 + q) * jnp.where(y > 0.5, 1.0, 1.0 / q)
        pt = jnp.maximum(-exp_logpt, -100.0)     # faithful clamp (never active for p in [0,1])
        base = 1.0 - pt
        if gamma == 1.0:
            w = base
        elif gamma == 2.0:
            w = base * base
        elif gamma == 0.5:
            w = jnp.sqrt(base)
        else:
            w = jnp.power(base, jnp.float32(gamma))
        return at_logpt * w

    # Fused weighted accumulation of both branches (same element count => shared mean).
    combined = (jnp.float32(target_importance) * focal_elem(tp_ref, tl_ref)
                + jnp.float32(1.0 - target_importance) * focal_elem(cp_ref, cl_ref))

    def accumulate(vals):
        # Sublane-only partial reduce into the VMEM vector accumulator; the single
        # cross-lane reduce + mean normalization happen once in the wrapper.
        acc_ref[...] += jnp.sum(vals, axis=0, keepdims=True)

    needs_mask = valid_in_last_tile < tile_rows * lane   # trace-time bool

    if needs_mask:
        @pl.when(t < n_tiles - 1)
        def _full_tiles():                                # no mask on interior tiles
            accumulate(combined)

        @pl.when(t == n_tiles - 1)
        def _boundary_tile():                             # mask only the boundary tile
            row = jax.lax.broadcasted_iota(jnp.int32, (tile_rows, lane), 0)
            col = jax.lax.broadcasted_iota(jnp.int32, (tile_rows, lane), 1)
            local = row * lane + col                      # tile-local index: no i32 overflow
            accumulate(jnp.where(local < valid_in_last_tile, combined, 0.0))
    elif has_dup:
        @pl.when(t < n_tiles)
        def _valid_tiles():                               # skip the clamped duplicate tile
            accumulate(combined)
    else:
        accumulate(combined)

    @pl.when(i == tiles_per_split - 1)
    def _finalize():
        out_ref[0] = acc_ref[...]                         # per-core (1, LANE) partial sums


def hooknet_loss(target_pred, context_pred, target_label, context_label, *,
                 target_importance=0.75, gamma=0.0, alpha=0.5):
    """target_pred/context_pred: (N,1,H,W) or (N,H,W) logits (f32 or bf16).
    target_label/context_label: binary {0,1} masks, same element count as preds."""
    def flat(x):
        x = jnp.asarray(x)
        if x.dtype == jnp.bool_:
            x = x.astype(jnp.float32)   # only bools get converted; others pass through
        return x.reshape(-1)            # C == 1: reshape == squeeze(1) + flatten

    tp, cp = flat(target_pred), flat(context_pred)
    tl, cl = flat(target_label), flat(context_label)

    n_valid = int(tp.shape[0])
    assert int(cp.shape[0]) == n_valid, "target/context branches must match in size"
    assert int(tl.shape[0]) == n_valid and int(cl.shape[0]) == n_valid

    # Pad only up to one LANE multiple (usually zero); partial trailing blocks and
    # the in-kernel boundary mask take care of everything else.
    pad = (-n_valid) % _LANE
    rows_total = (n_valid + pad) // _LANE

    def slab(x):
        if pad:
            x = jnp.pad(x, (0, pad))
        return x.reshape(rows_total, _LANE)

    tp_s, tl_s, cp_s, cl_s = slab(tp), slab(tl), slab(cp), slab(cl)

    # Single tile when it fits (block == full array, so no (8,128) divisibility issue);
    # otherwise 1024-row tiles with a partial trailing block.
    tile_rows = rows_total if rows_total <= _MAX_TILE_ROWS else _MAX_TILE_ROWS
    n_tiles = -(-rows_total // tile_rows)

    num_splits = 2 if n_tiles >= 2 else 1        # v7x: one split per TensorCore
    tiles_per_split = -(-n_tiles // num_splits)
    has_dup = num_splits * tiles_per_split > n_tiles
    valid_in_last_tile = n_valid - (n_tiles - 1) * tile_rows * _LANE

    if has_dup:
        # Clamp so the duplicated last iteration never issues an OOB DMA; its
        # contribution is skipped inside the kernel.
        def in_map(c, i):
            return (jnp.minimum(c * tiles_per_split + i, n_tiles - 1), 0)
    else:
        def in_map(c, i):
            return (c * tiles_per_split + i, 0)

    tile_spec = pl.BlockSpec((tile_rows, _LANE), in_map)
    out_spec = pl.BlockSpec((1, 1, _LANE), lambda c, i: (c, 0, 0))

    kernel = functools.partial(
        _hooknet_loss_kernel,
        alpha=float(alpha),
        gamma=float(gamma),
        target_importance=float(target_importance),
        n_tiles=n_tiles,
        tiles_per_split=tiles_per_split,
        tile_rows=tile_rows,
        lane=_LANE,
        valid_in_last_tile=valid_in_last_tile,
        has_dup=has_dup,
    )

    bytes_in = sum(int(a.size) * a.dtype.itemsize for a in (tp_s, tl_s, cp_s, cl_s))
    cost = pl.CostEstimate(
        flops=30 * n_valid,
        transcendentals=(6 if float(gamma) == 0.0 else 8) * n_valid,
        bytes_accessed=bytes_in + num_splits * _LANE * 4,
    )

    partials = pl.pallas_call(
        kernel,
        out_shape=jax.ShapeDtypeStruct((num_splits, 1, _LANE), jnp.float32),
        grid_spec=pltpu.PrefetchScalarGridSpec(
            num_scalar_prefetch=0,
            grid=(num_splits, tiles_per_split),
            in_specs=[tile_spec, tile_spec, tile_spec, tile_spec],
            out_specs=out_spec,
            scratch_shapes=[pltpu.VMEM((1, _LANE), jnp.float32)],
        ),
        compiler_params=pltpu.CompilerParams(
            dimension_semantics=("parallel", "arbitrary"),   # v7x: split across 2 TCs
            vmem_limit_bytes=32 * 1024 * 1024,               # fits v5e/v6e/v7x budgets
        ),
        cost_estimate=cost,
    )(tp_s, tl_s, cp_s, cl_s)

    # One cross-lane reduce over (num_splits, 1, 512) partials + mean normalization.
    return jnp.sum(partials) * jnp.float32(1.0 / n_valid)


def _reference_loss(tp, cp, tl, cl, target_importance=0.75, gamma=0.0, alpha=0.5):
    """Pure-JAX reference mirroring the PyTorch module literally."""
    def focal(pred_logits, labels):
        pred = jax.nn.sigmoid(pred_logits)           # HookNetLoss(logits=True)
        if pred.ndim == 4:
            pred = pred[:, 0]                        # squeeze(1)
        y = labels.astype(jnp.float32)
        logpt = jnp.maximum(pred, 0.0) - pred * y + jnp.log1p(jnp.exp(-jnp.abs(pred)))
        at = jnp.where(y > 0.5, alpha, 1.0 - alpha)
        pt = jnp.maximum(-jnp.exp(logpt), -100.0)
        return jnp.mean(at * (1.0 - pt) ** gamma * logpt)
    return (target_importance * focal(tp, tl)
            + (1.0 - target_importance) * focal(cp, cl))


if __name__ == "__main__":
    key = jax.random.PRNGKey(0)
    k1, k2, k3, k4 = jax.random.split(key, 4)

    N, H, W = 2, 16, 16
    # Predicted logits from target and context branches (NCHW, C=1).
    target_pred = jax.random.normal(k1, (N, 1, H, W), dtype=jnp.float32)
    context_pred = jax.random.normal(k2, (N, 1, H, W), dtype=jnp.float32)
    # Binary ground-truth masks.
    target_label = (jax.random.uniform(k3, (N, H, W)) > 0.5).astype(jnp.float32)
    context_label = (jax.random.uniform(k4, (N, H, W)) > 0.5).astype(jnp.float32)

    # Default config (gamma=0 fast path).
    loss = hooknet_loss(target_pred, context_pred, target_label, context_label,
                        target_importance=0.75, gamma=0.0, alpha=0.5)
    loss = jax.block_until_ready(loss)
    ref = _reference_loss(target_pred, context_pred, target_label, context_label,
                          target_importance=0.75, gamma=0.0, alpha=0.5)
    assert np.allclose(np.asarray(loss), np.asarray(ref), rtol=1e-5, atol=1e-5), (
        float(loss), float(ref))

    # Non-trivial gamma / alpha (exercises the focusing-term path with the exp-reuse rewrite).
    loss2 = hooknet_loss(target_pred, context_pred, target_label, context_label,
                         target_importance=0.6, gamma=2.0, alpha=0.25)
    loss2 = jax.block_until_ready(loss2)
    ref2 = _reference_loss(target_pred, context_pred, target_label, context_label,
                           target_importance=0.6, gamma=2.0, alpha=0.25)
    assert np.allclose(np.asarray(loss2), np.asarray(ref2), rtol=1e-5, atol=1e-5), (
        float(loss2), float(ref2))

    print("KERNEL_OK")
</pallas_src>

<mosaic_0001>
module attributes {stable_mosaic.version = 11 : i64} {
  func.func @_hooknet_loss_kernel(%arg0: i32, %arg1: i32, %arg2: memref<1x512xf32, #tpu.memory_space<vmem>>, %arg3: memref<1x512xf32, #tpu.memory_space<vmem>>, %arg4: memref<1x512xf32, #tpu.memory_space<vmem>>, %arg5: memref<1x512xf32, #tpu.memory_space<vmem>>, %arg6: memref<1x1x512xf32, #tpu.memory_space<vmem>>, %arg7: memref<1x512xf32, #tpu.memory_space<vmem>>) attributes {dimension_semantics = [#tpu.dimension_semantics<parallel>, #tpu.dimension_semantics<arbitrary>], iteration_bounds = array<i64: 1, 1>, scalar_prefetch = 0 : i64, scratch_operands = 1 : i64, tpu.core_type = #tpu.core_type<tc>, window_params = [{transform_indices = @transform_0, window_bounds = array<i64: 1, 512>}, {transform_indices = @transform_1, window_bounds = array<i64: 1, 512>}, {transform_indices = @transform_2, window_bounds = array<i64: 1, 512>}, {transform_indices = @transform_3, window_bounds = array<i64: 1, 512>}, {transform_indices = @transform_4, window_bounds = array<i64: 1, 1, 512>}]} {
    %c0_i32 = arith.constant 0 : i32
    %0 = arith.cmpi eq, %arg1, %c0_i32 : i32
    %1 = arith.extui %0 : i1 to i32
    %c0_i32_0 = arith.constant 0 : i32
    %2 = arith.cmpi ne, %1, %c0_i32_0 : i32
    scf.if %2 {
      %cst_28 = arith.constant 0.000000e+00 : f32
      %54 = vector.broadcast %cst_28 : f32 to vector<1x512xf32>
      %c0_29 = arith.constant 0 : index
      %c0_30 = arith.constant 0 : index
      %55 = vector.load %arg7[%c0_29, %c0_30] : memref<1x512xf32, #tpu.memory_space<vmem>>, vector<1x512xf32>
      tpu.vector_store %arg7[%c0_29, %c0_30], %54 {strides = array<i32>} : memref<1x512xf32, #tpu.memory_space<vmem>>, vector<1x512xf32>,
    } else {
    }
    %c0 = arith.constant 0 : index
    %c0_1 = arith.constant 0 : index
    %3 = vector.load %arg2[%c0, %c0_1] : memref<1x512xf32, #tpu.memory_space<vmem>>, vector<1x512xf32>
    %c0_2 = arith.constant 0 : index
    %c0_3 = arith.constant 0 : index
    %4 = vector.load %arg3[%c0_2, %c0_3] : memref<1x512xf32, #tpu.memory_space<vmem>>, vector<1x512xf32>
    %cst = arith.constant 5.000000e-01 : f32
    %5 = vector.broadcast %cst : f32 to vector<1x512xf32>
    %6 = arith.mulf %5, %3 : vector<1x512xf32>
    %7 = math.tanh %6 : vector<1x512xf32>
    %cst_4 = arith.constant 5.000000e-01 : f32
    %8 = vector.broadcast %cst_4 : f32 to vector<1x512xf32>
    %9 = arith.mulf %8, %7 : vector<1x512xf32>
    %cst_5 = arith.constant 5.000000e-01 : f32
    %10 = vector.broadcast %cst_5 : f32 to vector<1x512xf32>
    %11 = arith.addf %9, %10 : vector<1x512xf32>
    %cst_6 = arith.constant 0.000000e+00 : f32
    %12 = vector.broadcast %cst_6 : f32 to vector<1x512xf32>
    %13 = arith.subf %12, %11 : vector<1x512xf32>
    %14 = math.exp %13 : vector<1x512xf32>
    %cst_7 = arith.constant 1.000000e+00 : f32
    %15 = vector.broadcast %cst_7 : f32 to vector<1x512xf32>
    %16 = arith.subf %15, %4 : vector<1x512xf32>
    %17 = arith.mulf %11, %16 : vector<1x512xf32>
    %18 = math.log1p %14 : vector<1x512xf32>
    %19 = arith.addf %17, %18 : vector<1x512xf32>
    %cst_8 = arith.constant 5.000000e-01 : f32
    %20 = vector.broadcast %cst_8 : f32 to vector<1x512xf32>
    %21 = arith.mulf %20, %19 : vector<1x512xf32>
    %cst_9 = arith.constant 7.500000e-01 : f32
    %22 = vector.broadcast %cst_9 : f32 to vector<1x512xf32>
    %23 = arith.mulf %22, %21 : vector<1x512xf32>
    %c0_10 = arith.constant 0 : index
    %c0_11 = arith.constant 0 : index
    %24 = vector.load %arg4[%c0_10, %c0_11] : memref<1x512xf32, #tpu.memory_space<vmem>>, vector<1x512xf32>
    %c0_12 = arith.constant 0 : index
    %c0_13 = arith.constant 0 : index
    %25 = vector.load %arg5[%c0_12, %c0_13] : memref<1x512xf32, #tpu.memory_space<vmem>>, vector<1x512xf32>
    %cst_14 = arith.constant 5.000000e-01 : f32
    %26 = vector.broadcast %cst_14 : f32 to vector<1x512xf32>
    %27 = arith.mulf %26, %24 : vector<1x512xf32>
    %28 = math.tanh %27 : vector<1x512xf32>
    %cst_15 = arith.constant 5.000000e-01 : f32
    %29 = vector.broadcast %cst_15 : f32 to vector<1x512xf32>
    %30 = arith.mulf %29, %28 : vector<1x512xf32>
    %cst_16 = arith.constant 5.000000e-01 : f32
    %31 = vector.broadcast %cst_16 : f32 to vector<1x512xf32>
    %32 = arith.addf %30, %31 : vector<1x512xf32>
    %cst_17 = arith.constant 0.000000e+00 : f32
    %33 = vector.broadcast %cst_17 : f32 to vector<1x512xf32>
    %34 = arith.subf %33, %32 : vector<1x512xf32>
    %35 = math.exp %34 : vector<1x512xf32>
    %cst_18 = arith.constant 1.000000e+00 : f32
    %36 = vector.broadcast %cst_18 : f32 to vector<1x512xf32>
    %37 = arith.subf %36, %25 : vector<1x512xf32>
    %38 = arith.mulf %32, %37 : vector<1x512xf32>
    %39 = math.log1p %35 : vector<1x512xf32>
    %40 = arith.addf %38, %39 : vector<1x512xf32>
    %cst_19 = arith.constant 5.000000e-01 : f32
    %41 = vector.broadcast %cst_19 : f32 to vector<1x512xf32>
    %42 = arith.mulf %41, %40 : vector<1x512xf32>
    %cst_20 = arith.constant 2.500000e-01 : f32
    %43 = vector.broadcast %cst_20 : f32 to vector<1x512xf32>
    %44 = arith.mulf %43, %42 : vector<1x512xf32>
    %45 = arith.addf %23, %44 : vector<1x512xf32>
    %c0_21 = arith.constant 0 : index
    %c0_22 = arith.constant 0 : index
    %46 = vector.load %arg7[%c0_21, %c0_22] : memref<1x512xf32, #tpu.memory_space<vmem>>, vector<1x512xf32>
    %cst_23 = arith.constant dense<0.000000e+00> : vector<512xf32>
    %47 = vector.multi_reduction <add>, %45, %cst_23 [0] : vector<1x512xf32> to vector<512xf32>
    %48 = vector.shape_cast %47 : vector<512xf32> to vector<1x512xf32>
    %49 = arith.addf %46, %48 : vector<1x512xf32>
    %c0_24 = arith.constant 0 : index
    %c0_25 = arith.constant 0 : index
    %50 = vector.load %arg7[%c0_24, %c0_25] : memref<1x512xf32, #tpu.memory_space<vmem>>, vector<1x512xf32>
    tpu.vector_store %arg7[%c0_24, %c0_25], %49 {strides = array<i32>} : memref<1x512xf32, #tpu.memory_space<vmem>>, vector<1x512xf32>,
    %c0_i32_26 = arith.constant 0 : i32
    %51 = arith.cmpi eq, %arg1, %c0_i32_26 : i32
    %52 = arith.extui %51 : i1 to i32
    %c0_i32_27 = arith.constant 0 : i32
    %53 = arith.cmpi ne, %52, %c0_i32_27 : i32
    scf.if %53 {
      %c0_28 = arith.constant 0 : index
      %c0_29 = arith.constant 0 : index
      %54 = vector.load %arg7[%c0_28, %c0_29] : memref<1x512xf32, #tpu.memory_space<vmem>>, vector<1x512xf32>
      %c0_30 = arith.constant 0 : index
      %c0_31 = arith.constant 0 : index
      %c0_32 = arith.constant 0 : index
      %55 = vector.load %arg6[%c0_30, %c0_31, %c0_32] : memref<1x1x512xf32, #tpu.memory_space<vmem>>, vector<1x1x512xf32>
      %56 = vector.shape_cast %55 : vector<1x1x512xf32> to vector<1x512xf32>
      %57 = vector.shape_cast %54 : vector<1x512xf32> to vector<1x1x512xf32>
      tpu.vector_store %arg6[%c0_30, %c0_31, %c0_32], %57 {strides = array<i32>} : memref<1x1x512xf32, #tpu.memory_space<vmem>>, vector<1x1x512xf32>,
    } else {
    }
    return
  }
  func.func @transform_0(%arg0: i32, %arg1: i32) -> (i32, i32) {
    %c1_i32 = arith.constant 1 : i32
    %0 = arith.muli %arg0, %c1_i32 : i32
    %1 = arith.addi %0, %arg1 : i32
    %c0_i32 = arith.constant 0 : i32
    %c0_i32_0 = arith.constant 0 : i32
    return %1, %c0_i32 : i32, i32
  }
  func.func @transform_1(%arg0: i32, %arg1: i32) -> (i32, i32) {
    %c1_i32 = arith.constant 1 : i32
    %0 = arith.muli %arg0, %c1_i32 : i32
    %1 = arith.addi %0, %arg1 : i32
    %c0_i32 = arith.constant 0 : i32
    %c0_i32_0 = arith.constant 0 : i32
    return %1, %c0_i32 : i32, i32
  }
  func.func @transform_2(%arg0: i32, %arg1: i32) -> (i32, i32) {
    %c1_i32 = arith.constant 1 : i32
    %0 = arith.muli %arg0, %c1_i32 : i32
    %1 = arith.addi %0, %arg1 : i32
    %c0_i32 = arith.constant 0 : i32
    %c0_i32_0 = arith.constant 0 : i32
    return %1, %c0_i32 : i32, i32
  }
  func.func @transform_3(%arg0: i32, %arg1: i32) -> (i32, i32) {
    %c1_i32 = arith.constant 1 : i32
    %0 = arith.muli %arg0, %c1_i32 : i32
    %1 = arith.addi %0, %arg1 : i32
    %c0_i32 = arith.constant 0 : i32
    %c0_i32_0 = arith.constant 0 : i32
    return %1, %c0_i32 : i32, i32
  }
  func.func @transform_4(%arg0: i32, %arg1: i32) -> (i32, i32, i32) {
    %c0_i32 = arith.constant 0 : i32
    %c0_i32_0 = arith.constant 0 : i32
    %c0_i32_1 = arith.constant 0 : i32
    return %arg0, %c0_i32, %c0_i32_0 : i32, i32, i32
  }
}

</mosaic_0001>

<llo_original>
// kernel: tpu_custom_call.1
$region0: #{tpu_custom_call.1}
  #allocation0 [shape = 'u32[]', space=smem, size = 0x4, offset = 0x4, fixed_abs, tag = 'smem constant byte address 0x4 - core index']
  #allocation1 [shape = 'u32[144,128]{1,0:T(1,128)}', space=vmem, size = 0x12000, scoped, tag = 'internal scratch']
  #allocation2 [shape = 'f32[1,512]{1,0:T(1,128)}', space=vmem, size = 0x800, scoped, tag = 'scratch operand']
  %s0 = inlined_call_operand.hbm [shape: f32[1,512], index: 0, kind: input, shape index: {}]
  %s1 = inlined_call_operand.hbm [shape: f32[1,512], index: 1, kind: input, shape index: {}]
  %s2 = inlined_call_operand.hbm [shape: f32[1,512], index: 2, kind: input, shape index: {}]
  %s3 = inlined_call_operand.vmem [shape: f32[1,512], index: 3, kind: input, shape index: {}]
  %s4 = inlined_call_operand.hbm [shape: f32[1,1,512], index: 4, kind: output, shape index: {}]
  %s5 = sld [smem:[#allocation0]]
  $region46: #{tpu_custom_call.1} parent=0
    _
  %s7 = ssub.s32 1, %s5
  %s8 = scalar_select 0, %s7, %s5
  $region1: #{tpu_custom_call.1} parent=0
    #allocation3 [shape = 'u8[2048]{0}', space=vmem, size = 0x800, scoped, tag = 'input window, operand 0, single buffered']
    #allocation4 [shape = 's32[1]{0}', space=sflag, size = 0x4, scoped, tag = 'scoped memory for tpu_custom_call.1']
    #allocation5 [shape = 's32[1]{0}', space=sflag, size = 0x4, scoped, tag = 'scoped memory for tpu_custom_call.1']
    #allocation6 [shape = 'u8[2048]{0}', space=vmem, size = 0x800, scoped, tag = 'input window, operand 1, single buffered']
    #allocation7 [shape = 's32[1]{0}', space=sflag, size = 0x4, scoped, tag = 'scoped memory for tpu_custom_call.1']
    #allocation8 [shape = 'u8[2048]{0}', space=vmem, size = 0x800, scoped, tag = 'input window, operand 2, single buffered']
    #allocation9 [shape = 'u8[2048]{0}', space=vmem, size = 0x800, scoped, tag = 'output window, operand 0, single buffered']
    %9 = vsyncpa [#allocation4], 0
    %10 = vsyncpa [#allocation7], 0
    %11 = vsyncpa [#allocation5], 0
    // Predicated region
    $region2: #{tpu_custom_call.1} parent=1 // pred_check
      _
    $region3: #{tpu_custom_call.1} parent=1 // pred_check_branch
      %13 = sbr.rel (0) target = $region5
    $region4: #{tpu_custom_call.1} parent=1 // pred_region
      %s14 = sadd.s32 0, 0
      %s16 = ssub.s32 64, 64
      %17 = vsyncadd [#allocation4], %s16
      %s18 = smul.addr %s14, 4
      %s19 = smul.addr %s18, 16
      %s20 = scalar_lea.hbm %s0, %s19
      %s22 = sshll.u32 [#allocation3], 4
      %s23 = int_to_ptr.vmem [resolvable:$true] %s22
      %25 = dma.hbm_to_vmem [thread:$0]  %s20, 64, %s23, [#allocation4]
    $region5: #{tpu_custom_call.1} parent=1 // pred_fallthru
      _
    // Predicated region
    $region6: #{tpu_custom_call.1} parent=1 // pred_check
      _
    $region7: #{tpu_custom_call.1} parent=1 // pred_check_branch
      %27 = sbr.rel (0) target = $region9
    $region8: #{tpu_custom_call.1} parent=1 // pred_region
      %s28 = sadd.s32 0, 0
      %s30 = ssub.s32 64, 64
      %31 = vsyncadd [#allocation7], %s30
      %s32 = smul.addr %s28, 4
      %s33 = smul.addr %s32, 16
      %s34 = scalar_lea.hbm %s1, %s33
      %s36 = sshll.u32 [#allocation6], 4
      %s37 = int_to_ptr.vmem [resolvable:$true] %s36
      %39 = dma.hbm_to_vmem [thread:$0]  %s34, 64, %s37, [#allocation7]
    $region9: #{tpu_custom_call.1} parent=1 // pred_fallthru
      _
    // Predicated region
    $region10: #{tpu_custom_call.1} parent=1 // pred_check
      _
    $region11: #{tpu_custom_call.1} parent=1 // pred_check_branch
      %41 = sbr.rel (0) target = $region13
    $region12: #{tpu_custom_call.1} parent=1 // pred_region
      %s42 = sadd.s32 0, 0
      %s44 = ssub.s32 64, 64
      %45 = vsyncadd [#allocation7], %s44
      %s46 = smul.addr %s42, 4
      %s47 = smul.addr %s46, 16
      %s48 = scalar_lea.hbm %s2, %s47
      %s50 = sshll.u32 [#allocation8], 4
      %s51 = int_to_ptr.vmem [resolvable:$true] %s50
      %53 = dma.hbm_to_vmem [thread:$0]  %s48, 64, %s51, [#allocation7]
    $region13: #{tpu_custom_call.1} parent=1 // pred_fallthru
      _
    // Predicated region
    $region14: #{tpu_custom_call.1} parent=1 // pred_check
      _
    $region15: #{tpu_custom_call.1} parent=1 // pred_check_branch
      %55 = sbr.rel (0) target = $region17
    $region16: #{tpu_custom_call.1} parent=1 // pred_region
      %s56 = sadd.s32 0, 0
      %p57 = scmp.lt.s32.totalorder %s56, 0
      %s58 = scalar_select %p57, %s56, 0
      %s59 = smul.addr %s58, 4
      %s60 = scalar_lea.vmem %s3, %s59
      %s61 = sadd.s32 0, 0
    $region17: #{tpu_custom_call.1} parent=1 // pred_fallthru
      _
    // Predicated region
    $region18: #{tpu_custom_call.1} parent=1 // pred_check
      _
    $region19: #{tpu_custom_call.1} parent=1 // pred_check_branch
      %63 = sbr.rel (0) target = $region21
    $region20: #{tpu_custom_call.1} parent=1 // pred_region
      %64 = dma.done [#allocation4], 64
    $region21: #{tpu_custom_call.1} parent=1 // pred_fallthru
      _
    // Predicated region
    $region22: #{tpu_custom_call.1} parent=1 // pred_check
      _
    $region23: #{tpu_custom_call.1} parent=1 // pred_check_branch
      %66 = sbr.rel (0) target = $region25
    $region24: #{tpu_custom_call.1} parent=1 // pred_region
      %67 = dma.done [#allocation7], 64
    $region25: #{tpu_custom_call.1} parent=1 // pred_fallthru
      _
    // Predicated region
    $region26: #{tpu_custom_call.1} parent=1 // pred_check
      _
    $region27: #{tpu_custom_call.1} parent=1 // pred_check_branch
      %69 = sbr.rel (0) target = $region29
    $region28: #{tpu_custom_call.1} parent=1 // pred_region
      %70 = dma.done [#allocation7], 64
    $region29: #{tpu_custom_call.1} parent=1 // pred_fallthru
      _
    %s71 = sadd.s32 0, 0
    %p72 = scmp.lt.s32.totalorder %s71, 0
    %s73 = scalar_select %p72, %s71, 0
    %s74 = smul.addr %s73, 4
    %s75 = scalar_lea.vmem %s3, %s74
    %s76 = sadd.s32 0, 0
    %s77 = sadd.s32 0, 0
    %s78 = sadd.s32 0, 0
    %s79 = sadd.s32 0, 0
    %p80 = scmp.lt.s32.totalorder %s79, 0
    %s81 = scalar_select %p80, %s79, 0
    %s82 = smul.addr %s81, 4
    %s83 = scalar_lea.vmem %s3, %s82
    %s84 = sadd.s32 0, 0
    %p85 = scmp.eq.s32.totalorder 0, 0
    // Predicated region
    $region30: #{tpu_custom_call.1} parent=1 // pred_check
      %p86 = pneg %p85
    $region31: #{tpu_custom_call.1} parent=1 // pred_check_branch
      %88 = sbr.rel (%p86) target = $region33
    $region32: #{tpu_custom_call.1} parent=1 // pred_region
      %v89 = vlaneseq
      %vm90 = vcmp.ge.s32.totalorder %v89, 0
      %vm91 = vcmp.lt.s32.totalorder %v89, 512
      %vm92 = vmand %vm90, %vm91
      %93 = vst.msk [vmem:[#allocation2] sm:$0xf] %vm92, 0.0
    $region33: #{tpu_custom_call.1} parent=1 // pred_fallthru
      _
    %v94 = vld [vmem:[#allocation3] sm:$0xf]
    %v95 = vld [vmem:[#allocation6] sm:$0xf]
    %v96 = vmul.f32 %v94, 0.5
    %v97 = vtanh.pop %v96
    %v98 = vmul.f32 %v97, 0.5
    %v99 = vadd.f32 %v98, 0.5
    %v100 = vsub.f32 0.0, %v99
    %v101 = vmul.f32 %v100, 1.442695
    %v102 = vpow.pop %v101
    %v103 = vsub.f32 1.0, %v95
    %v104 = vmul.f32 %v99, %v103
    %v105 = vadd.f32 %v102, 1.0
    %v106 = vlog2.pop %v105
    %v107 = vmul.f32 %v106, 0.6931472
    %v108 = vmul.f32 -0.5, %v102
    %v109 = vadd.f32 %v108, 1.0
    %v110 = vmul.f32 %v109, %v102
    %v111 = vand.u32 2147483647, %v102
    %vm112 = vcmp.lt.f32.partialorder %v111, 0.0004427343
    %v113 = vsel %vm112, %v110, %v107
    %v114 = vadd.f32 %v104, %v113
    %v115 = vmul.f32 %v114, 0.5
    %v116 = vmul.f32 %v115, 0.75
    %v117 = vld [vmem:[#allocation8] sm:$0xf]
    %v118 = vld [vmem:[%s83] sm:$0xf]
    %v119 = vmul.f32 %v117, 0.5
    %v120 = vtanh.pop %v119
    %v121 = vmul.f32 %v120, 0.5
    %v122 = vadd.f32 %v121, 0.5
    %v123 = vsub.f32 0.0, %v122
    %v124 = vmul.f32 %v123, 1.442695
    %v125 = vpow.pop %v124
    %v126 = vsub.f32 1.0, %v118
    %v127 = vmul.f32 %v122, %v126
    %v128 = vadd.f32 %v125, 1.0
    %v129 = vlog2.pop %v128
    %v130 = vmul.f32 %v129, 0.6931472
    %v131 = vmul.f32 -0.5, %v125
    %v132 = vadd.f32 %v131, 1.0
    %v133 = vmul.f32 %v132, %v125
    %v134 = vand.u32 2147483647, %v125
    %vm135 = vcmp.lt.f32.partialorder %v134, 0.0004427343
    %v136 = vsel %vm135, %v133, %v130
    %v137 = vadd.f32 %v127, %v136
    %v138 = vmul.f32 %v137, 0.5
    %v139 = vmul.f32 %v138, 0.25
    %v140 = vadd.f32 %v116, %v139
    %v141 = vld [vmem:[#allocation2] sm:$0xf]
    %v142 = vadd.f32 %v140, 0.0
    %v143 = vadd.f32 %v141, %v142
    %v144 = vlaneseq
    %vm145 = vcmp.ge.s32.totalorder %v144, 0
    %vm146 = vcmp.lt.s32.totalorder %v144, 512
    %vm147 = vmand %vm145, %vm146
    %148 = vst.msk [vmem:[#allocation2] sm:$0xf] %vm147, %v143
    // Predicated region
    $region34: #{tpu_custom_call.1} parent=1 // pred_check
      %p149 = pneg %p85
    $region35: #{tpu_custom_call.1} parent=1 // pred_check_branch
      %151 = sbr.rel (%p149) target = $region37
    $region36: #{tpu_custom_call.1} parent=1 // pred_region
      %v152 = vld [vmem:[#allocation2] sm:$0xf]
      %153 = vst.msk [vmem:[#allocation9] sm:$0xf] %vm147, %v152
    $region37: #{tpu_custom_call.1} parent=1 // pred_fallthru
      _
    // Predicated region
    $region38: #{tpu_custom_call.1} parent=1 // pred_check
      _
    $region39: #{tpu_custom_call.1} parent=1 // pred_check_branch
      %155 = sbr.rel (0) target = $region41
    $region40: #{tpu_custom_call.1} parent=1 // pred_region
      %s157 = ssub.s32 64, 64
      %158 = vsyncadd [#allocation5], %s157
      %s160 = sshll.u32 [#allocation9], 4
      %s161 = int_to_ptr.vmem [resolvable:$true] %s160
      %163 = dma.vmem_to_hbm [thread:$0]  %s161, 64, %s4, [#allocation5]
    $region41: #{tpu_custom_call.1} parent=1 // pred_fallthru
      _
    // Predicated region
    $region42: #{tpu_custom_call.1} parent=1 // pred_check
      _
    $region43: #{tpu_custom_call.1} parent=1 // pred_check_branch
      %165 = sbr.rel (0) target = $region45
    $region44: #{tpu_custom_call.1} parent=1 // pred_region
      %166 = dma.done [#allocation5], 64
    $region45: #{tpu_custom_call.1} parent=1 // pred_fallthru
      _
    %167 = vsyncpa [#allocation4], 1
    %168 = vsyncpa [#allocation7], 1
    %169 = vsyncpa [#allocation5], 1

</llo_original>
